<compile_context>
chip_gen: v6e
topology: v6e:2x2x1
jax: 0.10.0
libtpu: 0.0.40
codegen_flags: <defaults>
</compile_context>

<pallas_src>
import numpy as np
import jax
import jax.numpy as jnp
from jax.experimental import pallas as pl
from jax.experimental.pallas import tpu as pltpu

# The 9 input shifts (dy, dx) whose union covers the 2x2 taps of all four
# output sub-pixel phases of a k=4, s=2, p=1 transposed convolution.
_SHIFTS = tuple((dy, dx) for dy in (-1, 0, 1) for dx in (-1, 0, 1))

# Kernel-tap index used by output phase offset p (0/1) for input shift d:
#   oh = 2*m + p, ih = m + d  ->  kh = oh - 2*ih + 1 = p - 2*d + 1
_TAP = {(0, 0): 1, (0, -1): 3, (1, 0): 2, (1, 1): 0}


def _make_upsample_kernel(C, H, W):
    HW = H * W

    def kernel(x_ref, mask_ref, w_ref, b_ref, out_ref):
        x = x_ref[0]                                            # (C, HW) f32
        parts = []
        for s, (dy, dx) in enumerate(_SHIFTS):
            if dy == 0 and dx == 0:
                parts.append(x)
                continue
            shift = (-(dy * W + dx)) % HW
            shifted = pltpu.roll(x, shift=shift, axis=1)        # XLU lane rotate
            parts.append(shifted * mask_ref[s:s + 1, :])        # zero wrapped/OOB lanes
        patch = jnp.concatenate(parts, axis=0).astype(jnp.bfloat16)   # (9C, HW)
        # One MXU matmul produces all 4 sub-pixel phases at once (f32 accumulate).
        y = jnp.dot(w_ref[...], patch, preferred_element_type=jnp.float32)  # (4C, HW)
        out_ref[0] = y + b_ref[...]                             # bias broadcast (4C, 1)

    return kernel


def _build_phase_weight(w_t):
    """ConvTranspose2d weight (C_in, C_out, 4, 4) -> phase matmul matrix (4*C_out, 9*C_in)."""
    C_in, C_out = w_t.shape[0], w_t.shape[1]
    phase_rows = []
    for py in (0, 1):
        for px in (0, 1):
            blocks = []
            for (dy, dx) in _SHIFTS:
                if (py, dy) in _TAP and (px, dx) in _TAP:
                    kh, kw = _TAP[(py, dy)], _TAP[(px, dx)]
                    blocks.append(jnp.transpose(w_t[:, :, kh, kw]))   # (C_out, C_in)
                else:
                    blocks.append(jnp.zeros((C_out, C_in), w_t.dtype))
            phase_rows.append(jnp.concatenate(blocks, axis=1))        # (C_out, 9*C_in)
    return jnp.concatenate(phase_rows, axis=0)                        # (4*C_out, 9*C_in)


def _build_shift_masks(H, W):
    """(9, H*W) {0,1} masks: 1 where the shifted sample is in-bounds (no wraparound)."""
    HW = H * W
    masks = np.zeros((9, HW), np.float32)
    for s, (dy, dx) in enumerate(_SHIFTS):
        m = np.zeros((H, W), np.float32)
        m[max(0, -dy):H - max(0, dy), max(0, -dx):W - max(0, dx)] = 1.0
        masks[s] = m.reshape(HW)
    return masks


def upsample_forward_pallas(x, t, w_t, bias):
    """x: (B, C, H, W) f32; t ignored (as in the module).  Returns (B, C, 2H, 2W)."""
    del t  # the module's forward discards its time argument
    B, C, H, W = x.shape
    HW = H * W

    wmat = _build_phase_weight(w_t).astype(jnp.bfloat16)        # (4C, 9C) bf16 MXU operand
    bvec = jnp.tile(bias.astype(jnp.float32), 4).reshape(4 * C, 1)
    masks = jnp.asarray(_build_shift_masks(H, W))               # (9, HW) f32
    x_flat = x.reshape(B, C, HW)

    kernel = _make_upsample_kernel(C, H, W)
    cost = pl.CostEstimate(
        flops=int(2 * B * (4 * C) * (9 * C) * HW),
        transcendentals=0,
        bytes_accessed=int(B * C * HW * 4 + 9 * HW * 4
                           + 4 * C * 9 * C * 2 + 4 * C * 4 + B * 4 * C * HW * 4),
    )

    y = pl.pallas_call(
        kernel,
        out_shape=jax.ShapeDtypeStruct((B, 4 * C, HW), jnp.float32),
        grid_spec=pltpu.PrefetchScalarGridSpec(
            num_scalar_prefetch=0,
            grid=(B,),
            in_specs=[
                pl.BlockSpec((1, C, HW), lambda b: (b, 0, 0)),       # x (one sample)
                pl.BlockSpec((9, HW), lambda b: (0, 0)),             # boundary masks
                pl.BlockSpec((4 * C, 9 * C), lambda b: (0, 0)),      # phase weight matrix
                pl.BlockSpec((4 * C, 1), lambda b: (0, 0)),          # bias (per phase row)
            ],
            out_specs=pl.BlockSpec((1, 4 * C, HW), lambda b: (b, 0, 0)),
        ),
        compiler_params=pltpu.CompilerParams(dimension_semantics=("parallel",)),
        cost_estimate=cost,
    )(x_flat, masks, wmat, bvec)

    # depth-to-space: (B, py, px, co, H, W) -> (B, co, 2H, 2W)  (pure layout plumbing)
    y = y.reshape(B, 2, 2, C, H, W)
    y = jnp.transpose(y, (0, 3, 4, 1, 5, 2))
    return y.reshape(B, C, 2 * H, 2 * W)


def reference_upsample(x, w_t, bias):
    """Pure-JAX reference: ConvTranspose2d(C, C, 4, 2, 1) in NCHW (PyTorch semantics)."""
    # conv_transpose(x, W, stride 2, pad 1) == conv(dilate(x, 2), rot180(W) with
    # in/out channels swapped, pad = k - 1 - p = 2).
    w_conv = jnp.transpose(w_t[:, :, ::-1, ::-1], (1, 0, 2, 3))   # (C_out, C_in, 4, 4)
    y = jax.lax.conv_general_dilated(
        x, w_conv, window_strides=(1, 1), padding=((2, 2), (2, 2)),
        lhs_dilation=(2, 2), rhs_dilation=(1, 1),
        dimension_numbers=("NCHW", "OIHW", "NCHW"),
        precision=jax.lax.Precision.HIGHEST)
    return y + bias[None, :, None, None]


if __name__ == "__main__":
    B, C, H, W = 2, 4, 16, 16

    root = jax.random.PRNGKey(0)
    kx, kw, kb, kt = jax.random.split(root, 4)
    x = jax.random.normal(kx, (B, C, H, W), jnp.float32)
    bound = 1.0 / np.sqrt(C * 4 * 4)
    w_t = jax.random.uniform(kw, (C, C, 4, 4), jnp.float32, -bound, bound)
    bias = jax.random.uniform(kb, (C,), jnp.float32, -bound, bound)
    t = jax.random.normal(kt, (B,), jnp.float32)     # unused, as in the module

    out = upsample_forward_pallas(x, t, w_t, bias)
    out = jax.block_until_ready(out)

    ref = reference_upsample(x, w_t, bias)
    assert out.shape == (B, C, 2 * H, 2 * W)
    np.testing.assert_allclose(np.asarray(out), np.asarray(ref), rtol=1e-2, atol=1e-2)
    print("KERNEL_OK")
</pallas_src>

<mosaic_0001>
module attributes {stable_mosaic.version = 11 : i64} {
  func.func @kernel(%arg0: i32, %arg1: memref<1x4x256xf32, #tpu.memory_space<vmem>>, %arg2: memref<9x256xf32, #tpu.memory_space<vmem>>, %arg3: memref<16x36xbf16, #tpu.memory_space<vmem>>, %arg4: memref<16x1xf32, #tpu.memory_space<vmem>>, %arg5: memref<1x16x256xf32, #tpu.memory_space<vmem>>) attributes {dimension_semantics = [#tpu.dimension_semantics<parallel>], iteration_bounds = array<i64: 2>, scalar_prefetch = 0 : i64, scratch_operands = 0 : i64, tpu.core_type = #tpu.core_type<tc>, window_params = [{transform_indices = @transform_0, window_bounds = array<i64: 1, 4, 256>}, {pipeline_mode = #tpu.pipeline_mode<synchronous>, transform_indices = @transform_1, window_bounds = array<i64: 9, 256>}, {pipeline_mode = #tpu.pipeline_mode<synchronous>, transform_indices = @transform_2, window_bounds = array<i64: 16, 36>}, {pipeline_mode = #tpu.pipeline_mode<synchronous>, transform_indices = @transform_3, window_bounds = array<i64: 16, 1>}, {transform_indices = @transform_4, window_bounds = array<i64: 1, 16, 256>}]} {
    %c0 = arith.constant 0 : index
    %c0_0 = arith.constant 0 : index
    %c0_1 = arith.constant 0 : index
    %0 = vector.load %arg1[%c0, %c0_0, %c0_1] : memref<1x4x256xf32, #tpu.memory_space<vmem>>, vector<1x4x256xf32>
    %1 = vector.shape_cast %0 : vector<1x4x256xf32> to vector<4x256xf32>
    %c17_i32 = arith.constant 17 : i32
    %2 = tpu.dynamic_rotate %1 by %c17_i32 dim 1 : vector<4x256xf32>, i32 -> vector<4x256xf32>
    %c0_2 = arith.constant 0 : index
    %c0_3 = arith.constant 0 : index
    %3 = vector.load %arg2[%c0_2, %c0_3] : memref<9x256xf32, #tpu.memory_space<vmem>>, vector<1x256xf32>
    %4 = vector.broadcast %3 : vector<1x256xf32> to vector<4x256xf32>
    %5 = arith.mulf %2, %4 : vector<4x256xf32>
    %c16_i32 = arith.constant 16 : i32
    %6 = tpu.dynamic_rotate %1 by %c16_i32 dim 1 : vector<4x256xf32>, i32 -> vector<4x256xf32>
    %c1 = arith.constant 1 : index
    %c0_4 = arith.constant 0 : index
    %7 = vector.load %arg2[%c1, %c0_4] : memref<9x256xf32, #tpu.memory_space<vmem>>, vector<1x256xf32>
    %8 = vector.broadcast %7 : vector<1x256xf32> to vector<4x256xf32>
    %9 = arith.mulf %6, %8 : vector<4x256xf32>
    %c15_i32 = arith.constant 15 : i32
    %10 = tpu.dynamic_rotate %1 by %c15_i32 dim 1 : vector<4x256xf32>, i32 -> vector<4x256xf32>
    %c2 = arith.constant 2 : index
    %c0_5 = arith.constant 0 : index
    %11 = vector.load %arg2[%c2, %c0_5] : memref<9x256xf32, #tpu.memory_space<vmem>>, vector<1x256xf32>
    %12 = vector.broadcast %11 : vector<1x256xf32> to vector<4x256xf32>
    %13 = arith.mulf %10, %12 : vector<4x256xf32>
    %c1_i32 = arith.constant 1 : i32
    %14 = tpu.dynamic_rotate %1 by %c1_i32 dim 1 : vector<4x256xf32>, i32 -> vector<4x256xf32>
    %c3 = arith.constant 3 : index
    %c0_6 = arith.constant 0 : index
    %15 = vector.load %arg2[%c3, %c0_6] : memref<9x256xf32, #tpu.memory_space<vmem>>, vector<1x256xf32>
    %16 = vector.broadcast %15 : vector<1x256xf32> to vector<4x256xf32>
    %17 = arith.mulf %14, %16 : vector<4x256xf32>
    %c255_i32 = arith.constant 255 : i32
    %18 = tpu.dynamic_rotate %1 by %c255_i32 dim 1 : vector<4x256xf32>, i32 -> vector<4x256xf32>
    %c5 = arith.constant 5 : index
    %c0_7 = arith.constant 0 : index
    %19 = vector.load %arg2[%c5, %c0_7] : memref<9x256xf32, #tpu.memory_space<vmem>>, vector<1x256xf32>
    %20 = vector.broadcast %19 : vector<1x256xf32> to vector<4x256xf32>
    %21 = arith.mulf %18, %20 : vector<4x256xf32>
    %c241_i32 = arith.constant 241 : i32
    %22 = tpu.dynamic_rotate %1 by %c241_i32 dim 1 : vector<4x256xf32>, i32 -> vector<4x256xf32>
    %c6 = arith.constant 6 : index
    %c0_8 = arith.constant 0 : index
    %23 = vector.load %arg2[%c6, %c0_8] : memref<9x256xf32, #tpu.memory_space<vmem>>, vector<1x256xf32>
    %24 = vector.broadcast %23 : vector<1x256xf32> to vector<4x256xf32>
    %25 = arith.mulf %22, %24 : vector<4x256xf32>
    %c240_i32 = arith.constant 240 : i32
    %26 = tpu.dynamic_rotate %1 by %c240_i32 dim 1 : vector<4x256xf32>, i32 -> vector<4x256xf32>
    %c7 = arith.constant 7 : index
    %c0_9 = arith.constant 0 : index
    %27 = vector.load %arg2[%c7, %c0_9] : memref<9x256xf32, #tpu.memory_space<vmem>>, vector<1x256xf32>
    %28 = vector.broadcast %27 : vector<1x256xf32> to vector<4x256xf32>
    %29 = arith.mulf %26, %28 : vector<4x256xf32>
    %c239_i32 = arith.constant 239 : i32
    %30 = tpu.dynamic_rotate %1 by %c239_i32 dim 1 : vector<4x256xf32>, i32 -> vector<4x256xf32>
    %c8 = arith.constant 8 : index
    %c0_10 = arith.constant 0 : index
    %31 = vector.load %arg2[%c8, %c0_10] : memref<9x256xf32, #tpu.memory_space<vmem>>, vector<1x256xf32>
    %32 = vector.broadcast %31 : vector<1x256xf32> to vector<4x256xf32>
    %33 = arith.mulf %30, %32 : vector<4x256xf32>
    %34 = tpu.concatenate %5, %9, %13, %17, %1, %21, %25, %29, %33 in 0 : vector<4x256xf32>, vector<4x256xf32>, vector<4x256xf32>, vector<4x256xf32>, vector<4x256xf32>, vector<4x256xf32>, vector<4x256xf32>, vector<4x256xf32>, vector<4x256xf32> -> vector<36x256xf32>
    %35 = arith.truncf %34 : vector<36x256xf32> to vector<36x256xbf16>
    %c0_11 = arith.constant 0 : index
    %c0_12 = arith.constant 0 : index
    %36 = vector.load %arg3[%c0_11, %c0_12] : memref<16x36xbf16, #tpu.memory_space<vmem>>, vector<16x36xbf16>
    %cst = arith.constant dense<0.000000e+00> : vector<16x256xf32>
    %37 = tpu.matmul %36, %35, %cst {dimension_numbers = #tpu.dot_dimension_numbers<[1], [0], [0], [1], [0, 0, 1, 1], [], []>} : vector<16x36xbf16>, vector<36x256xbf16>, vector<16x256xf32> -> vector<16x256xf32>
    %c0_13 = arith.constant 0 : index
    %c0_14 = arith.constant 0 : index
    %38 = vector.load %arg4[%c0_13, %c0_14] : memref<16x1xf32, #tpu.memory_space<vmem>>, vector<16x1xf32>
    %39 = vector.broadcast %38 : vector<16x1xf32> to vector<16x256xf32>
    %40 = arith.addf %37, %39 : vector<16x256xf32>
    %c0_15 = arith.constant 0 : index
    %c0_16 = arith.constant 0 : index
    %c0_17 = arith.constant 0 : index
    %41 = vector.load %arg5[%c0_15, %c0_16, %c0_17] : memref<1x16x256xf32, #tpu.memory_space<vmem>>, vector<1x16x256xf32>
    %42 = vector.shape_cast %41 : vector<1x16x256xf32> to vector<16x256xf32>
    %43 = vector.shape_cast %40 : vector<16x256xf32> to vector<1x16x256xf32>
    tpu.vector_store %arg5[%c0_15, %c0_16, %c0_17], %43 {strides = array<i32>} : memref<1x16x256xf32, #tpu.memory_space<vmem>>, vector<1x16x256xf32>,
    return
  }
  func.func @transform_0(%arg0: i32) -> (i32, i32, i32) {
    %c0_i32 = arith.constant 0 : i32
    %c0_i32_0 = arith.constant 0 : i32
    %c0_i32_1 = arith.constant 0 : i32
    return %arg0, %c0_i32, %c0_i32_0 : i32, i32, i32
  }
  func.func @transform_1(%arg0: i32) -> (i32, i32) {
    %c0_i32 = arith.constant 0 : i32
    %c0_i32_0 = arith.constant 0 : i32
    %c0_i32_1 = arith.constant 0 : i32
    return %c0_i32, %c0_i32_0 : i32, i32
  }
  func.func @transform_2(%arg0: i32) -> (i32, i32) {
    %c0_i32 = arith.constant 0 : i32
    %c0_i32_0 = arith.constant 0 : i32
    %c0_i32_1 = arith.constant 0 : i32
    return %c0_i32, %c0_i32_0 : i32, i32
  }
  func.func @transform_3(%arg0: i32) -> (i32, i32) {
    %c0_i32 = arith.constant 0 : i32
    %c0_i32_0 = arith.constant 0 : i32
    %c0_i32_1 = arith.constant 0 : i32
    return %c0_i32, %c0_i32_0 : i32, i32
  }
  func.func @transform_4(%arg0: i32) -> (i32, i32, i32) {
    %c0_i32 = arith.constant 0 : i32
    %c0_i32_0 = arith.constant 0 : i32
    %c0_i32_1 = arith.constant 0 : i32
    return %arg0, %c0_i32, %c0_i32_0 : i32, i32, i32
  }
}

</mosaic_0001>

<llo_original>
// kernel: tpu_custom_call.1
$region0: #{tpu_custom_call.1}
  #allocation0 [shape = 'u32[]', space=smem, size = 0x4, offset = 0x4, fixed_abs, tag = 'smem constant byte address 0x4 - core index']
  #allocation1 [shape = 'u32[144,128]{1,0:T(1,128)}', space=vmem, size = 0x12000, scoped, tag = 'internal scratch']
  %s0 = inlined_call_operand.vmem [shape: f32[2,4,256], index: 0, kind: input, shape index: {}]
  %s1 = inlined_call_operand.hbm [shape: f32[9,256], index: 1, kind: input, shape index: {}]
  %s2 = inlined_call_operand.hbm [shape: bf16[16,36], index: 2, kind: input, shape index: {}]
  %s3 = inlined_call_operand.vmem [shape: f32[16,1], index: 3, kind: input, shape index: {}]
  %s4 = inlined_call_operand.hbm [shape: f32[2,16,256], index: 4, kind: output, shape index: {}]
  %s5 = sld [smem:[#allocation0]]
  $region57: #{tpu_custom_call.1} parent=0
    _
  %s7 = ssub.s32 1, %s5
  %s8 = scalar_select 0, %s7, %s5
  $region1: #{tpu_custom_call.1} parent=0
    #allocation2 [shape = 'u8[16384]{0}', space=vmem, size = 0x4000, scoped, tag = 'input window, operand 1, single buffered']
    #allocation3 [shape = 's32[2]{0}', space=sflag, size = 0x8, scoped, tag = 'scoped memory for tpu_custom_call.1']
    #allocation4 [shape = 's32[2]{0}', space=sflag, size = 0x8, scoped, tag = 'scoped memory for tpu_custom_call.1']
    #allocation5 [shape = 'u8[4096]{0}', space=vmem, size = 0x1000, scoped, tag = 'input window, operand 2, single buffered']
    #allocation6 [shape = 's32[1]{0}', space=sflag, size = 0x4, scoped, tag = 'scoped memory for tpu_custom_call.1']
    #allocation7 [shape = 'u8[32768]{0}', space=vmem, size = 0x8000, scoped, tag = 'output window, operand 0']
    %9 = vsyncpa [#allocation3], 0
    %10 = vsyncpa [#allocation6], 0
    %11 = vsyncpa [#allocation4], 0
    %s12 = scalar_lea.sflag [#allocation4], 1
    %13 = vsyncpa %s12, 0
    loop: start=0, step=1, limit=4
    $region2: #{tpu_custom_call.1} parent=1 // loop_pre_header
      _
    $region3: #{tpu_custom_call.1} parent=1 // loop_header
      %s15 = sphi 0, %s19
      %p16 = scmp.ge.s32.totalorder %s15, 4
      %s25 = sphi 0, %s27
      %s28 = sphi 0, %s25
      %s29 = sphi 0, %s28
      %s45 = sphi 0, %s29
      %s49 = sphi 0, %s49
      %s51 = sphi 0, %s49
      %s52 = sphi 0, %s51
      %s66 = sphi 0, %s52
      %s70 = sphi 0, %s70
      %s72 = sphi 0, %s70
      %s73 = sphi 0, %s72
      %s87 = sphi 0, %s73
      %s91 = sphi 0, %s91
      %s93 = sphi 0, %s91
      %s94 = sphi 0, %s93
      %s108 = sphi 0, %s94
      %s114 = sphi 0, %s116
      %s117 = sphi 0, %s114
      %s118 = sphi 0, %s117
      %s134 = sphi 0, %s118
    $region4: #{tpu_custom_call.1} parent=1 // loop_header_branch
      %18 = sbr.rel (%p16) target = $region8
    $region5: #{tpu_custom_call.1} parent=1 // loop_body
      %s20 = ssub.s32 %s15, 1
      %s21 = ssub.s32 %s15, 2
      %s22 = sadd.s32 %s15, 1
      %s23 = ssub.s32 %s15, %s22
      %p24 = scmp.eq.s32.totalorder %s23, 0
      %s26 = sadd.s32 %s25, 1
      %s27 = scalar_select %p24, %s25, %s26
      %p30 = pneg %p24
      %p31 = scmp.eq.s32.totalorder %s15, 1
      %p32 = por %p30, %p31
      %p33 = scmp.ne.s32.totalorder %s25, %s28
      %p34 = scmp.eq.s32.totalorder %s15, 0
      %p35 = por %p33, %p34
      %p36 = scmp.ne.s32.totalorder %s25, %s28
      %p37 = scmp.eq.s32.totalorder %s20, 1
      %p38 = por %p36, %p37
      %p39 = scmp.ne.s32.totalorder %s28, %s29
      %p40 = scmp.eq.s32.totalorder %s20, 0
      %p41 = por %p39, %p40
      %p42 = scmp.ne.s32.totalorder %s28, %s29
      %p43 = scmp.eq.s32.totalorder %s21, 1
      %p44 = por %p42, %p43
      %p46 = scmp.ne.s32.totalorder %s29, %s45
      %p47 = scmp.eq.s32.totalorder %s21, 0
      %p48 = por %p46, %p47
      %s50 = sadd.s32 %s49, 1
      %p53 = scmp.eq.s32.totalorder %s15, 1
      %p54 = scmp.ne.s32.totalorder %s49, %s51
      %p55 = scmp.eq.s32.totalorder %s15, 0
      %p56 = por %p54, %p55
      %p57 = scmp.ne.s32.totalorder %s49, %s51
      %p58 = scmp.eq.s32.totalorder %s20, 1
      %p59 = por %p57, %p58
      %p60 = scmp.ne.s32.totalorder %s51, %s52
      %p61 = scmp.eq.s32.totalorder %s20, 0
      %p62 = por %p60, %p61
      %p63 = scmp.ne.s32.totalorder %s51, %s52
      %p64 = scmp.eq.s32.totalorder %s21, 1
      %p65 = por %p63, %p64
      %p67 = scmp.ne.s32.totalorder %s52, %s66
      %p68 = scmp.eq.s32.totalorder %s21, 0
      %p69 = por %p67, %p68
      %s71 = sadd.s32 %s70, 1
      %p74 = scmp.eq.s32.totalorder %s15, 1
      %p75 = scmp.ne.s32.totalorder %s70, %s72
      %p76 = scmp.eq.s32.totalorder %s15, 0
      %p77 = por %p75, %p76
      %p78 = scmp.ne.s32.totalorder %s70, %s72
      %p79 = scmp.eq.s32.totalorder %s20, 1
      %p80 = por %p78, %p79
      %p81 = scmp.ne.s32.totalorder %s72, %s73
      %p82 = scmp.eq.s32.totalorder %s20, 0
      %p83 = por %p81, %p82
      %p84 = scmp.ne.s32.totalorder %s72, %s73
      %p85 = scmp.eq.s32.totalorder %s21, 1
      %p86 = por %p84, %p85
      %p88 = scmp.ne.s32.totalorder %s73, %s87
      %p89 = scmp.eq.s32.totalorder %s21, 0
      %p90 = por %p88, %p89
      %s92 = sadd.s32 %s91, 1
      %p95 = scmp.eq.s32.totalorder %s15, 1
      %p96 = scmp.ne.s32.totalorder %s91, %s93
      %p97 = scmp.eq.s32.totalorder %s15, 0
      %p98 = por %p96, %p97
      %p99 = scmp.ne.s32.totalorder %s91, %s93
      %p100 = scmp.eq.s32.totalorder %s20, 1
      %p101 = por %p99, %p100
      %p102 = scmp.ne.s32.totalorder %s93, %s94
      %p103 = scmp.eq.s32.totalorder %s20, 0
      %p104 = por %p102, %p103
      %p105 = scmp.ne.s32.totalorder %s93, %s94
      %p106 = scmp.eq.s32.totalorder %s21, 1
      %p107 = por %p105, %p106
      %p109 = scmp.ne.s32.totalorder %s94, %s108
      %p110 = scmp.eq.s32.totalorder %s21, 0
      %p111 = por %p109, %p110
      %s112 = ssub.s32 %s15, %s22
      %p113 = scmp.eq.s32.totalorder %s112, 0
      %s115 = sadd.s32 %s114, 1
      %s116 = scalar_select %p113, %s114, %s115
      %p119 = pneg %p113
      %p120 = scmp.eq.s32.totalorder %s15, 1
      %p121 = por %p119, %p120
      %p122 = scmp.ne.s32.totalorder %s114, %s117
      %p123 = scmp.eq.s32.totalorder %s15, 0
      %p124 = por %p122, %p123
      %p125 = scmp.ne.s32.totalorder %s114, %s117
      %p126 = scmp.eq.s32.totalorder %s20, 1
      %p127 = por %p125, %p126
      %p128 = scmp.ne.s32.totalorder %s117, %s118
      %p129 = scmp.eq.s32.totalorder %s20, 0
      %p130 = por %p128, %p129
      %p131 = scmp.ne.s32.totalorder %s117, %s118
      %p132 = scmp.eq.s32.totalorder %s21, 1
      %p133 = por %p131, %p132
      %p135 = scmp.ne.s32.totalorder %s118, %s134
      %p136 = scmp.eq.s32.totalorder %s21, 0
      %p137 = por %p135, %p136
      %p138 = scmp.le.s32.totalorder 1, %s15
      %p139 = scmp.lt.s32.totalorder %s15, 3
      %p140 = pnand %p138, %p139
      %p141 = pneg %p140
      // Predicated region
      $region9: #{tpu_custom_call.1} parent=5 // pred_check
        _
      $region10: #{tpu_custom_call.1} parent=5 // pred_check_branch
        %143 = sbr.rel (%p140) target = $region12
      $region11: #{tpu_custom_call.1} parent=5 // pred_region
        %s144 = ssub.s32 %s15, 1
        // Predicated region
        $region13: #{tpu_custom_call.1} parent=11 // pred_check
          %p145 = pneg %p62
        $region14: #{tpu_custom_call.1} parent=11 // pred_check_branch
          %147 = sbr.rel (%p145) target = $region16
        $region15: #{tpu_custom_call.1} parent=11 // pred_region
          %s149 = ssub.s32 512, 512
          %150 = vsyncadd [#allocation3], %s149
          %s151 = sshll.u32 [#allocation2], 4
          %s152 = int_to_ptr.vmem [resolvable:$true] %s151
          %157 = dma.hbm_to_vmem [thread:$0]  %s1, 512, %s152, [#allocation3], 256, 256, 16
        $region16: #{tpu_custom_call.1} parent=11 // pred_fallthru
          _
        // Predicated region
        $region17: #{tpu_custom_call.1} parent=11 // pred_check
          %p158 = pneg %p83
        $region18: #{tpu_custom_call.1} parent=11 // pred_check_branch
          %160 = sbr.rel (%p158) target = $region20
        $region19: #{tpu_custom_call.1} parent=11 // pred_region
          %s162 = ssub.s32 128, 128
          %163 = vsyncadd [#allocation6], %s162
          %s164 = sshll.u32 [#allocation5], 4
          %s165 = int_to_ptr.vmem [resolvable:$true] %s164
          %170 = dma.hbm_to_vmem [thread:$0]  %s2, 128, %s165, [#allocation6], 64, 64, 4
        $region20: #{tpu_custom_call.1} parent=11 // pred_fallthru
          _
        // Predicated region
        $region21: #{tpu_custom_call.1} parent=11 // pred_check
          %p171 = pneg %p104
        $region22: #{tpu_custom_call.1} parent=11 // pred_check_branch
          %173 = sbr.rel (%p171) target = $region24
        $region23: #{tpu_custom_call.1} parent=11 // pred_region
          _
        $region24: #{tpu_custom_call.1} parent=11 // pred_fallthru
          _
      $region12: #{tpu_custom_call.1} parent=5 // pred_fallthru
        _
      %p174 = scmp.lt.s32.totalorder %s15, 2
      // Predicated region
      $region25: #{tpu_custom_call.1} parent=5 // pred_check
        %p175 = pneg %p174
      $region26: #{tpu_custom_call.1} parent=5 // pred_check_branch
        %177 = sbr.rel (%p175) target = $region28
      $region27: #{tpu_custom_call.1} parent=5 // pred_region
        // Predicated region
        $region29: #{tpu_custom_call.1} parent=27 // pred_check
          %p178 = pneg %p35
        $region30: #{tpu_custom_call.1} parent=27 // pred_check_branch
          %180 = sbr.rel (%p178) target = $region32
        $region31: #{tpu_custom_call.1} parent=27 // pred_region
          %p181 = scmp.lt.s32.totalorder %s15, 1
          %s182 = scalar_select %p181, %s15, 1
          %s183 = smul.addr %s182, 2
          %s184 = smul.addr %s183, 4
          %s185 = scalar_lea.vmem %s0, %s184
        $region32: #{tpu_custom_call.1} parent=27 // pred_fallthru
          _
      $region28: #{tpu_custom_call.1} parent=5 // pred_fallthru
        _
      %p186 = scmp.le.s32.totalorder 1, %s15
      %p187 = scmp.lt.s32.totalorder %s15, 3
      %p188 = pnand %p186, %p187
      %p189 = pneg %p188
      // Predicated region
      $region33: #{tpu_custom_call.1} parent=5 // pred_check
        _
      $region34: #{tpu_custom_call.1} parent=5 // pred_check_branch
        %191 = sbr.rel (%p188) target = $region36
      $region35: #{tpu_custom_call.1} parent=5 // pred_region
        %s192 = ssub.s32 %s15, 1
        // Predicated region
        $region37: #{tpu_custom_call.1} parent=35 // pred_check
          %p193 = pneg %p62
        $region38: #{tpu_custom_call.1} parent=35 // pred_check_branch
          %195 = sbr.rel (%p193) target = $region40
        $region39: #{tpu_custom_call.1} parent=35 // pred_region
          %196 = dma.done [#allocation3], 512
        $region40: #{tpu_custom_call.1} parent=35 // pred_fallthru
          _
        // Predicated region
        $region41: #{tpu_custom_call.1} parent=35 // pred_check
          %p197 = pneg %p83
        $region42: #{tpu_custom_call.1} parent=35 // pred_check_branch
          %199 = sbr.rel (%p197) target = $region44
        $region43: #{tpu_custom_call.1} parent=35 // pred_region
          %200 = dma.done [#allocation6], 128
        $region44: #{tpu_custom_call.1} parent=35 // pred_fallthru
          _
        %p201 = scmp.lt.s32.totalorder %s20, 1
        %s202 = scalar_select %p201, %s20, 1
        %s203 = smul.addr %s202, 2
        %s204 = smul.addr %s203, 4
        %s205 = scalar_lea.vmem %s0, %s204
        %p206 = pneg %p41
        %p207 = pneg %p38
        %p208 = pneg %p62
        %p209 = pneg %p59
        %p210 = pneg %p83
        %p211 = pneg %p80
        %p212 = pneg %p104
        %p213 = pneg %p101
        %p214 = pneg %p130
        %p215 = pneg %p127
        %s216 = sand.u32 %s117, 1
        %s217 = scalar_lea.sflag [#allocation4], %s216
        %s218 = sand.u32 %s117, 1
        %s219 = smul.addr %s218, 32
        %s220 = scalar_lea.vmem [#allocation7], %s219
        %p221 = scmp.lt.s32.totalorder %s20, 1
        %s222 = scalar_select %p221, %s20, 1
        %s223 = smul.addr %s222, 2
        %s224 = smul.addr %s223, 4
        %s225 = scalar_lea.vmem %s0, %s224
        %v227 = vld [vmem:[%s225] sm:$0xff]
        %v229 = vcombine.high %v227, %v227
        %231 = vrot.lane.b32.xlu0 %v227, 17
        %v232 = vpop.permute.xlu0 %231
        %233 = vrot.lane.b32.xlu0 %v229, 17
        %v234 = vpop.permute.xlu0 %233
        %v235 = vlaneseq
        %v236 = vand.u32 %v235, 127
        %vm237 = vcmp.lt.s32.totalorder %v236, 17
        %v238 = vsel %vm237, %v232, %v234
        %v239 = vsel %vm237, %v234, %v232
        %v240 = vld [vmem:[#allocation2] ss:$8 sm:$0x3]
        %v242 = vlaneseq
        %v243 = vshrl.u32 %v242, 7
        %v244 = vsub.s32 0, %v243
        %v245 = vrot.slane %v240, %v244
        %v246 = vlaneseq
        %v247 = vshrl.u32 %v246, 7
        %v248 = vsub.s32 1, %v247
        %v249 = vrot.slane %v240, %v248
        %v252 = vmul.f32 %v239, %v245
        %v253 = vmul.f32 %v238, %v249
        %254 = vrot.lane.b32.xlu0 %v227, 16
        %v255 = vpop.permute.xlu0 %254
        %256 = vrot.lane.b32.xlu0 %v229, 16
        %v257 = vpop.permute.xlu0 %256
        %vm258 = vcmp.lt.s32.totalorder %v236, 16
        %v259 = vsel %vm258, %v255, %v257
        %v260 = vsel %vm258, %v257, %v255
        %s261 = scalar_lea.vmem [#allocation2], 1
        %v262 = vld [vmem:[%s261] ss:$8 sm:$0x3]
        %v264 = vlaneseq
        %v265 = vshrl.u32 %v264, 7
        %v266 = vsub.s32 0, %v265
        %v267 = vrot.slane %v262, %v266
        %v268 = vlaneseq
        %v269 = vshrl.u32 %v268, 7
        %v270 = vsub.s32 1, %v269
        %v271 = vrot.slane %v262, %v270
        %v274 = vmul.f32 %v260, %v267
        %v275 = vmul.f32 %v259, %v271
        %276 = vrot.lane.b32.xlu0 %v227, 15
        %v277 = vpop.permute.xlu0 %276
        %278 = vrot.lane.b32.xlu0 %v229, 15
        %v279 = vpop.permute.xlu0 %278
        %vm280 = vcmp.lt.s32.totalorder %v236, 15
        %v281 = vsel %vm280, %v277, %v279
        %v282 = vsel %vm280, %v279, %v277
        %s283 = scalar_lea.vmem [#allocation2], 2
        %v284 = vld [vmem:[%s283] ss:$8 sm:$0x3]
        %v286 = vlaneseq
        %v287 = vshrl.u32 %v286, 7
        %v288 = vsub.s32 0, %v287
        %v289 = vrot.slane %v284, %v288
        %v290 = vlaneseq
        %v291 = vshrl.u32 %v290, 7
        %v292 = vsub.s32 1, %v291
        %v293 = vrot.slane %v284, %v292
        %v296 = vmul.f32 %v282, %v289
        %v297 = vmul.f32 %v281, %v293
        %298 = vrot.lane.b32.xlu0 %v227, 1
        %v299 = vpop.permute.xlu0 %298
        %300 = vrot.lane.b32.xlu0 %v229, 1
        %v301 = vpop.permute.xlu0 %300
        %vm302 = vcmp.lt.s32.totalorder %v236, 1
        %v303 = vsel %vm302, %v299, %v301
        %v304 = vsel %vm302, %v301, %v299
        %s305 = scalar_lea.vmem [#allocation2], 3
        %v306 = vld [vmem:[%s305] ss:$8 sm:$0x3]
        %v308 = vlaneseq
        %v309 = vshrl.u32 %v308, 7
        %v310 = vsub.s32 0, %v309
        %v311 = vrot.slane %v306, %v310
        %v312 = vlaneseq
        %v313 = vshrl.u32 %v312, 7
        %v314 = vsub.s32 1, %v313
        %v315 = vrot.slane %v306, %v314
        %v318 = vmul.f32 %v304, %v311
        %v319 = vmul.f32 %v303, %v315
        %320 = vrot.lane.b32.xlu0 %v227, 127
        %v321 = vpop.permute.xlu0 %320
        %322 = vrot.lane.b32.xlu0 %v229, 127
        %v323 = vpop.permute.xlu0 %322
        %vm324 = vcmp.lt.s32.totalorder %v236, 127
        %v325 = vsel %vm324, %v321, %v323
        %v326 = vsel %vm324, %v323, %v321
        %s327 = scalar_lea.vmem [#allocation2], 5
        %v328 = vld [vmem:[%s327] ss:$8 sm:$0x3]
        %v330 = vlaneseq
        %v331 = vshrl.u32 %v330, 7
        %v332 = vsub.s32 0, %v331
        %v333 = vrot.slane %v328, %v332
        %v334 = vlaneseq
        %v335 = vshrl.u32 %v334, 7
        %v336 = vsub.s32 1, %v335
        %v337 = vrot.slane %v328, %v336
        %v340 = vmul.f32 %v325, %v333
        %v341 = vmul.f32 %v326, %v337
        %342 = vrot.lane.b32.xlu0 %v227, 113
        %v343 = vpop.permute.xlu0 %342
        %344 = vrot.lane.b32.xlu0 %v229, 113
        %v345 = vpop.permute.xlu0 %344
        %vm346 = vcmp.lt.s32.totalorder %v236, 113
        %v347 = vsel %vm346, %v343, %v345
        %v348 = vsel %vm346, %v345, %v343
        %s349 = scalar_lea.vmem [#allocation2], 6
        %v350 = vld [vmem:[%s349] ss:$8 sm:$0x3]
        %v352 = vlaneseq
        %v353 = vshrl.u32 %v352, 7
        %v354 = vsub.s32 0, %v353
        %v355 = vrot.slane %v350, %v354
        %v356 = vlaneseq
        %v357 = vshrl.u32 %v356, 7
        %v358 = vsub.s32 1, %v357
        %v359 = vrot.slane %v350, %v358
        %v362 = vmul.f32 %v347, %v355
        %v363 = vmul.f32 %v348, %v359
        %364 = vrot.lane.b32.xlu0 %v227, 112
        %v365 = vpop.permute.xlu0 %364
        %366 = vrot.lane.b32.xlu0 %v229, 112
        %v367 = vpop.permute.xlu0 %366
        %vm368 = vcmp.lt.s32.totalorder %v236, 112
        %v369 = vsel %vm368, %v365, %v367
        %v370 = vsel %vm368, %v367, %v365
        %s371 = scalar_lea.vmem [#allocation2], 7
        %v372 = vld [vmem:[%s371] ss:$8 sm:$0x3]
        %v374 = vlaneseq
        %v375 = vshrl.u32 %v374, 7
        %v376 = vsub.s32 0, %v375
        %v377 = vrot.slane %v372, %v376
        %v378 = vlaneseq
        %v379 = vshrl.u32 %v378, 7
        %v380 = vsub.s32 1, %v379
        %v381 = vrot.slane %v372, %v380
        %v384 = vmul.f32 %v369, %v377
        %v385 = vmul.f32 %v370, %v381
        %386 = vrot.lane.b32.xlu0 %v227, 111
        %v387 = vpop.permute.xlu0 %386
        %388 = vrot.lane.b32.xlu0 %v229, 111
        %v389 = vpop.permute.xlu0 %388
        %vm390 = vcmp.lt.s32.totalorder %v236, 111
        %v391 = vsel %vm390, %v387, %v389
        %v392 = vsel %vm390, %v389, %v387
        %s393 = scalar_lea.vmem [#allocation2], 16
        %v394 = vld [vmem:[%s393] ss:$8 sm:$0x3]
        %v396 = vlaneseq
        %v397 = vshrl.u32 %v396, 7
        %v398 = vsub.s32 0, %v397
        %v399 = vrot.slane %v394, %v398
        %v400 = vlaneseq
        %v401 = vshrl.u32 %v400, 7
        %v402 = vsub.s32 1, %v401
        %v403 = vrot.slane %v394, %v402
        %v406 = vmul.f32 %v391, %v399
        %v407 = vmul.f32 %v392, %v403
        %v410 = vrot.slane %v274, 4
        %v411 = vrot.slane %v275, 4
        %v416 = vrot.slane %v318, 4
        %v417 = vrot.slane %v319, 4
        %v422 = vrot.slane %v340, 4
        %v423 = vrot.slane %v341, 4
        %v428 = vrot.slane %v384, 4
        %v429 = vrot.slane %v385, 4
        %vm432 = vcmask 1043456
        %v433 = vsel %vm432, %v252, %v410
        %v434 = vsel %vm432, %v253, %v411
        %v435 = vsel %vm432, %v296, %v416
        %v436 = vsel %vm432, %v297, %v417
        %v437 = vsel %vm432, %v227, %v422
        %v438 = vsel %vm432, %v229, %v423
        %v439 = vsel %vm432, %v362, %v428
        %v440 = vsel %vm432, %v363, %v429
        %v441 = vpack.c.bf16 %v435, %v433
        %v442 = vpack.c.bf16 %v436, %v434
        %v443 = vpack.c.bf16 %v439, %v437
        %v444 = vpack.c.bf16 %v440, %v438
        %v445 = vpack.c.bf16 %v406, %v406
        %v446 = vpack.c.bf16 %v407, %v407
        %v447 = vld [vmem:[#allocation5] sm:$0xf]
        %v448 = vld [vmem:[#allocation5 + $0x4] sm:$0xf]
        %v449 = vld [vmem:[%s3] sm:$0xff]
        %v450 = vld [vmem:[%s3 + $0x8] sm:$0xff]
        %452 = vset.pattern.permute.xlu0 0
        %453 = vperm.xlu0 %452, %v449
        %v454 = vpop.permute.xlu0 %453
        %457 = vset.pattern.permute.xlu0 0
        %458 = vperm.xlu0 %457, %v450
        %v459 = vpop.permute.xlu0 %458
        %v463 = vunpack.c.l.b16 %v447
        %v464 = vunpack.c.l.b16 %v448
        %v465 = vpack.c.b16 %v464, %v463
        %vm466 = vcmask 293888
        %v468 = vsel %vm466, %v465, 0
        %vm470 = vcmask 1041408
        %v472 = vsel %vm470, %v445, 0
        %v475 = vsel %vm470, %v446, 0
        %477 = vmatprep.subr.bf16.mxu0 0
        %478 = vmatpush1.bf16.msra.mxu0 0
        %479 = vmatprep.subr.bf16.mxu0 0
        %480 = vmatpush1.bf16.msra.mxu0 0
        %481 = vmatprep.subr.bf16.mxu0 0
        %482 = vmatpush1.bf16.msra.mxu0 0
        %483 = vmatprep.subr.bf16.mxu0 0
        %484 = vmatpush1.bf16.msra.mxu0 0
        %485 = vmatprep.subr.bf16.mxu0 0
        %486 = vmatpush1.bf16.msra.mxu0 0
        %487 = vmatprep.subr.bf16.mxu0 %v475
        %488 = vmatpush1.bf16.msra.mxu0 %v472
        %489 = vmatprep.subr.bf16.mxu0 %v444
        %490 = vmatpush1.bf16.msra.mxu0 %v443
        %491 = vmatprep.subr.bf16.mxu0 %v442
        %492 = vmatpush1.bf16.msra.mxu0 %v441
        %493 = vmatprep.subr.bf16.mxu0 0
        %494 = vmatpush2.bf16.msra.mxu0 0
        %495 = vmatprep.subr.bf16.mxu0 0
        %496 = vmatpush2.bf16.msra.mxu0 0
        %497 = vmatprep.subr.bf16.mxu0 0
        %498 = vmatpush2.bf16.msra.mxu0 0
        %499 = vmatprep.subr.bf16.mxu0 0
        %500 = vmatpush2.bf16.msra.mxu0 0
        %501 = vmatprep.subr.bf16.mxu0 0
        %502 = vmatpush2.bf16.msra.mxu0 0
        %503 = vmatprep.subr.bf16.mxu0 0
        %504 = vmatpush2.bf16.msra.mxu0 0
        %505 = vmatprep.subr.bf16.mxu0 0
        %506 = vmatpush2.bf16.msra.mxu0 0
        %507 = vmatprep.subr.bf16.mxu0 0
        %508 = vmatpush2.bf16.msra.mxu0 0
        %509 = vmatprep.mubr.bf16.mxu0 0
        %510 = vmatmul.mubr.bf16.gmra.mxu0 %v468
        %v511 = vpop.f32.mrf.mxu0
        %v512 = vadd.f32 %v454, %v511
        %v513 = vpop.f32.mrf.mxu0
        %v514 = vadd.f32 %v454, %v513
        %v515 = vpop.f32.mrf.mxu0
        %v516 = vadd.f32 %v459, %v515
        %v517 = vpop.f32.mrf.mxu0
        %v518 = vadd.f32 %v459, %v517
        %519 = vdwg.mxu0
        %520 = vst [vmem:[%s220] sm:$0xff] %v512
        %521 = vst [vmem:[%s220 + $0x8] sm:$0xff] %v514
        %522 = vst [vmem:[%s220 + $0x10] sm:$0xff] %v516
        %523 = vst [vmem:[%s220 + $0x18] sm:$0xff] %v518
        %s524 = sand.u32 %s117, 1
        %s525 = scalar_lea.sflag [#allocation4], %s524
        %s526 = sand.u32 %s117, 1
        %s527 = smul.addr %s526, 32
        %s528 = scalar_lea.vmem [#allocation7], %s527
        // Predicated region
        $region45: #{tpu_custom_call.1} parent=35 // pred_check
          %p529 = pneg %p127
        $region46: #{tpu_custom_call.1} parent=35 // pred_check_branch
          %531 = sbr.rel (%p529) target = $region48
        $region47: #{tpu_custom_call.1} parent=35 // pred_region
          %s533 = ssub.s32 512, 512
          %534 = vsyncadd %s525, %s533
          %s535 = smul.addr %s20, 4
          %s536 = smul.addr %s535, 128
          %s537 = scalar_lea.hbm %s4, %s536
          %s538 = sshll.u32 %s528, 4
          %s539 = int_to_ptr.vmem [resolvable:$true] %s538
          %544 = dma.vmem_to_hbm [thread:$0]  %s539, 512, %s537, %s525, 256, 256, 16
        $region48: #{tpu_custom_call.1} parent=35 // pred_fallthru
          _
      $region36: #{tpu_custom_call.1} parent=5 // pred_fallthru
        _
      %p545 = scmp.le.s32.totalorder 2, %s15
      // Predicated region
      $region49: #{tpu_custom_call.1} parent=5 // pred_check
        %p546 = pneg %p545
      $region50: #{tpu_custom_call.1} parent=5 // pred_check_branch
        %548 = sbr.rel (%p546) target = $region52
      $region51: #{tpu_custom_call.1} parent=5 // pred_region
        %s549 = ssub.s32 %s15, 2
        // Predicated region
        $region53: #{tpu_custom_call.1} parent=51 // pred_check
          %p550 = pneg %p133
        $region54: #{tpu_custom_call.1} parent=51 // pred_check_branch
          %552 = sbr.rel (%p550) target = $region56
        $region55: #{tpu_custom_call.1} parent=51 // pred_region
          %s553 = sand.u32 %s118, 1
          %s554 = scalar_lea.sflag [#allocation4], %s553
          %s555 = sand.u32 %s118, 1
          %s556 = smul.addr %s555, 32
          %s557 = scalar_lea.vmem [#allocation7], %s556
          %558 = dma.done %s554, 512
        $region56: #{tpu_custom_call.1} parent=51 // pred_fallthru
          _
      $region52: #{tpu_custom_call.1} parent=5 // pred_fallthru
        _
    $region6: #{tpu_custom_call.1} parent=1 // loop_footer
      %s19 = sadd.s32 1, %s15
    $region7: #{tpu_custom_call.1} parent=1 // loop_footer_branch
      %14 = sbr.rel target = $region3
    $region8: #{tpu_custom_call.1} parent=1 // loop_exit
      _
    %559 = vsyncpa [#allocation3], 1
    %s560 = scalar_lea.sflag [#allocation3], 1
    %561 = vsyncpa %s560, 1
    %562 = vsyncpa [#allocation6], 1
    %563 = vsyncpa [#allocation4], 1
    %s564 = scalar_lea.sflag [#allocation4], 1
    %565 = vsyncpa %s564, 1

</llo_original>
